<compile_context>
chip_gen: v7x
topology: tpu7x:2x2x1
jax: 0.10.0
libtpu: 0.0.40
codegen_flags: <defaults>
</compile_context>

<pallas_src>
import functools
import math

import jax
import jax.numpy as jnp
from jax import lax
from jax.experimental import pallas as pl
from jax.experimental.pallas import tpu as pltpu


def _round_up(a, b):
    return ((a + b - 1) // b) * b


# ---------------------------------------------------------------------------
# Kernel 1: row-tiled fused QKV projection   qkv = x @ [Wq/sqrt(C) | Wk | Wv]
# ---------------------------------------------------------------------------
def _proj_kernel(x_ref, w_ref, qkv_ref):
    qkv_ref[...] = jnp.dot(
        x_ref[...], w_ref[...], preferred_element_type=jnp.float32
    ).astype(qkv_ref.dtype)


def pallas_qkv_projection(x, w_qkv, *, tm):
    n, d = x.shape
    out_d = w_qkv.shape[1]
    return pl.pallas_call(
        _proj_kernel,
        out_shape=jax.ShapeDtypeStruct((n, out_d), jnp.float32),
        grid_spec=pltpu.PrefetchScalarGridSpec(
            num_scalar_prefetch=0,
            grid=(n // tm,),
            in_specs=[
                pl.BlockSpec((tm, d), lambda i: (i, 0)),       # x row tile
                pl.BlockSpec((d, out_d), lambda i: (0, 0)),    # weights resident
            ],
            out_specs=pl.BlockSpec((tm, out_d), lambda i: (i, 0)),
        ),
        compiler_params=pltpu.CompilerParams(
            dimension_semantics=("parallel",)),
    )(x, w_qkv)


# ---------------------------------------------------------------------------
# Kernel 2: flash-style attention, heads batched, tiled over (query, key)
# ---------------------------------------------------------------------------
def _flash_attn_kernel(q_ref, k_ref, v_ref, bias_ref, o_ref,
                       m_ref, l_ref, acc_ref, *, n_heads):
    ki = pl.program_id(1)

    @pl.when(ki == 0)
    def _():
        m_ref[...] = jnp.full_like(m_ref, -jnp.inf)
        l_ref[...] = jnp.zeros_like(l_ref)
        acc_ref[...] = jnp.zeros_like(acc_ref)

    # Heads as a dot_general batch dim: (H, tq, C) x (H, tk, C) -> (H, tq, tk),
    # contracting the last dims directly (no explicit k transpose).  q is already
    # pre-scaled by 1/sqrt(C) (folded into W_query).  The adjacency mask lives in
    # bias (-1e30 off-edge), so exp() underflows to exactly 0 there.
    s = lax.dot_general(
        q_ref[...], k_ref[...],
        dimension_numbers=(((2,), (2,)), ((0,), (0,))),
        preferred_element_type=jnp.float32,
    ) + bias_ref[...]

    m_prev = m_ref[...]
    m_new = jnp.maximum(m_prev, jnp.max(s, axis=-1, keepdims=True))
    corr = jnp.exp(m_prev - m_new)
    p = jnp.exp(s - m_new)
    l_ref[...] = corr * l_ref[...] + jnp.sum(p, axis=-1, keepdims=True)
    acc_ref[...] = corr * acc_ref[...] + lax.dot_general(
        p, v_ref[...],
        dimension_numbers=(((2,), (1,)), ((0,), (0,))),
        preferred_element_type=jnp.float32,
    )
    m_ref[...] = m_new

    @pl.when(ki == pl.num_programs(1) - 1)
    def _():
        # Normalize the (H, tq, C) accumulator (one reciprocal per row per head)
        # and emit a single lane-dense (tq, H*C) store.
        # TODO(synk): zero in-degree rows get a uniform softmax over all keys here
        #             (reference is undefined); assumes in-degree >= 1.
        out = acc_ref[...] * pl.reciprocal(l_ref[...], approx=False)
        o_ref[...] = jnp.concatenate(
            [out[h] for h in range(n_heads)], axis=-1
        ).astype(o_ref.dtype)


def pallas_flash_attention(q, k, v, bias, *, tq, tk):
    h, n_pad, c = q.shape
    return pl.pallas_call(
        functools.partial(_flash_attn_kernel, n_heads=h),
        out_shape=jax.ShapeDtypeStruct((n_pad, h * c), jnp.float32),
        grid_spec=pltpu.PrefetchScalarGridSpec(
            num_scalar_prefetch=0,
            grid=(n_pad // tq, n_pad // tk),
            in_specs=[
                pl.BlockSpec((h, tq, c), lambda qi, ki: (0, qi, 0)),   # q
                pl.BlockSpec((h, tk, c), lambda qi, ki: (0, ki, 0)),   # k
                pl.BlockSpec((h, tk, c), lambda qi, ki: (0, ki, 0)),   # v
                pl.BlockSpec((h, tq, tk), lambda qi, ki: (0, qi, ki)), # bias
            ],
            out_specs=pl.BlockSpec((tq, h * c), lambda qi, ki: (qi, 0)),
            scratch_shapes=[
                pltpu.VMEM((h, tq, 1), jnp.float32),   # running max
                pltpu.VMEM((h, tq, 1), jnp.float32),   # running denom
                pltpu.VMEM((h, tq, c), jnp.float32),   # output accumulator
            ],
        ),
        compiler_params=pltpu.CompilerParams(
            dimension_semantics=("parallel", "arbitrary")),
    )(q, k, v, bias)


# ---------------------------------------------------------------------------
# Module wrapper (weight concat, padding/tiling choice, bias scatter, layout)
# ---------------------------------------------------------------------------
def multi_head_attention_conv(x, edge_index, edge_attr, params, n_heads, head_dim):
    N, _ = x.shape
    H, C = n_heads, head_dim
    HC = H * C
    src, dst = edge_index[0], edge_index[1]

    # Tile selection: keeps the double-buffered bias tile (H*tq*tk*4B*2) under
    # ~5 MiB, i.e. inside the v5e 16 MiB scoped default and v7x's 64 MiB VMEM.
    if N <= 256:
        n_pad = _round_up(N, 8)
        tq = tk = n_pad
    else:
        tq, tk = 256, 512
        n_pad = _round_up(N, 512)          # lcm(tq, tk) so both axes tile evenly
    tm = n_pad if n_pad <= 512 else 512    # projection row tile

    # Fused QKV weight, with 1/sqrt(C) folded into W_query (zero kernel cost).
    w_qkv = jnp.concatenate(
        [params["w_query"] * (1.0 / math.sqrt(C)),
         params["w_key"], params["w_value"]], axis=1)

    x_pad = jnp.pad(x, ((0, n_pad - N), (0, 0)))
    qkv = pallas_qkv_projection(x_pad, w_qkv, tm=tm)            # (n_pad, 3*H*C)

    # Head-major q/k/v: wrapper-side layout plumbing so per-head access inside the
    # kernel is a leading (batch) index, not an 8-lane sub-vreg slice.
    q = jnp.transpose(qkv[:, :HC].reshape(n_pad, H, C), (1, 0, 2))
    k = jnp.transpose(qkv[:, HC:2 * HC].reshape(n_pad, H, C), (1, 0, 2))
    v = jnp.transpose(qkv[:, 2 * HC:].reshape(n_pad, H, C), (1, 0, 2))

    # Tiny edge projection stays in plain XLA (4-lane output would only waste an
    # MXU push / masked stores inside a Pallas kernel).
    eb = (edge_attr @ params["w_edge"]).astype(jnp.float32)     # (E, H)

    # Dense head-major bias with the adjacency mask folded in; padded rows/cols
    # keep -1e30 so padded keys contribute exactly zero attention weight.
    # TODO(synk): duplicate (parallel) edges are dropped by the .set() overwrite;
    #             production-sized graphs should use a sparse/prefetched scheme.
    bias = jnp.full((H, n_pad, n_pad), -1e30, jnp.float32).at[:, dst, src].set(eb.T)

    out = pallas_flash_attention(q, k, v, bias, tq=tq, tk=tk)
    return out[:N]


# ---------------------------------------------------------------------------
# Pure-JAX reference (edge-list formulation, mirrors the PyTorch code)
# ---------------------------------------------------------------------------
def reference(x, edge_index, edge_attr, params, n_heads, head_dim):
    N = x.shape[0]
    H, C = n_heads, head_dim
    src, dst = edge_index[0], edge_index[1]

    q = (x @ params["w_query"]).reshape(N, H, C)
    k = (x @ params["w_key"]).reshape(N, H, C)
    v = (x @ params["w_value"]).reshape(N, H, C)
    eb = edge_attr @ params["w_edge"]                        # (E, H)

    alpha_z = (q[dst] * k[src]).sum(-1) / math.sqrt(C) + eb  # (E, H)
    seg_max = jax.ops.segment_max(alpha_z, dst, num_segments=N)
    a = jnp.exp(alpha_z - seg_max[dst])
    seg_sum = jax.ops.segment_sum(a, dst, num_segments=N)
    alpha = a / seg_sum[dst]

    msg = v[src] * alpha[..., None]                          # (E, H, C)
    out = jax.ops.segment_sum(msg, dst, num_segments=N)      # (N, H, C)
    return out.reshape(N, H * C)


# ---------------------------------------------------------------------------
if __name__ == "__main__":
    # Small, module-consistent shapes.
    N = 16          # number of graph nodes
    DIM = 32        # node feature dim
    HEAD_DIM = 8
    N_HEADS = 4
    EDGE_DIM = 6

    key = jax.random.PRNGKey(0)
    kx, ke, k1, k2, k3, k4 = jax.random.split(key, 6)

    x = jax.random.normal(kx, (N, DIM), jnp.float32)

    # Simple graph: each node i receives edges from (i+1), (i+3), (i+5) mod N.
    dst = jnp.repeat(jnp.arange(N, dtype=jnp.int32), 3)
    src = (dst + jnp.tile(jnp.array([1, 3, 5], jnp.int32), N)) % N
    edge_index = jnp.stack([src, dst], axis=0)               # (2, E)
    E = edge_index.shape[1]
    edge_attr = jax.random.normal(ke, (E, EDGE_DIM), jnp.float32)

    # Deterministic parameter init (stored as (in, out), i.e. torch W^T).
    def init(k, fan_in, fan_out):
        b = 1.0 / math.sqrt(fan_in)
        return jax.random.uniform(k, (fan_in, fan_out), jnp.float32, -b, b)

    params = {
        "w_key":   init(k1, DIM, N_HEADS * HEAD_DIM),
        "w_query": init(k2, DIM, N_HEADS * HEAD_DIM),
        "w_value": init(k3, DIM, N_HEADS * HEAD_DIM),
        "w_edge":  init(k4, EDGE_DIM, N_HEADS),
    }

    out = multi_head_attention_conv(
        x, edge_index, edge_attr, params, N_HEADS, HEAD_DIM
    )
    out = jax.block_until_ready(out)

    ref = reference(x, edge_index, edge_attr, params, N_HEADS, HEAD_DIM)
    assert out.shape == (N, N_HEADS * HEAD_DIM), out.shape
    assert jnp.allclose(out, ref, rtol=1e-5, atol=1e-5), (
        float(jnp.max(jnp.abs(out - ref)))
    )
    print("KERNEL_OK")
</pallas_src>

<mosaic_0001>
module attributes {stable_mosaic.version = 11 : i64} {
  func.func @_proj_kernel(%arg0: i32, %arg1: memref<16x32xf32, #tpu.memory_space<vmem>>, %arg2: memref<32x96xf32, #tpu.memory_space<vmem>>, %arg3: memref<16x96xf32, #tpu.memory_space<vmem>>) attributes {dimension_semantics = [#tpu.dimension_semantics<parallel>], iteration_bounds = array<i64: 1>, scalar_prefetch = 0 : i64, scratch_operands = 0 : i64, tpu.core_type = #tpu.core_type<tc>, window_params = [{transform_indices = @transform_0, window_bounds = array<i64: 16, 32>}, {pipeline_mode = #tpu.pipeline_mode<synchronous>, transform_indices = @transform_1, window_bounds = array<i64: 32, 96>}, {transform_indices = @transform_2, window_bounds = array<i64: 16, 96>}]} {
    %c0 = arith.constant 0 : index
    %c0_0 = arith.constant 0 : index
    %0 = vector.load %arg1[%c0, %c0_0] : memref<16x32xf32, #tpu.memory_space<vmem>>, vector<16x32xf32>
    %c0_1 = arith.constant 0 : index
    %c0_2 = arith.constant 0 : index
    %1 = vector.load %arg2[%c0_1, %c0_2] : memref<32x96xf32, #tpu.memory_space<vmem>>, vector<32x96xf32>
    %cst = arith.constant dense<0.000000e+00> : vector<16x96xf32>
    %2 = tpu.matmul %0, %1, %cst {dimension_numbers = #tpu.dot_dimension_numbers<[1], [0], [0], [1], [0, 0, 1, 1], [], []>} : vector<16x32xf32>, vector<32x96xf32>, vector<16x96xf32> -> vector<16x96xf32>
    %c0_3 = arith.constant 0 : index
    %c0_4 = arith.constant 0 : index
    %3 = vector.load %arg3[%c0_3, %c0_4] : memref<16x96xf32, #tpu.memory_space<vmem>>, vector<16x96xf32>
    tpu.vector_store %arg3[%c0_3, %c0_4], %2 {strides = array<i32>} : memref<16x96xf32, #tpu.memory_space<vmem>>, vector<16x96xf32>,
    return
  }
  func.func @transform_0(%arg0: i32) -> (i32, i32) {
    %c0_i32 = arith.constant 0 : i32
    %c0_i32_0 = arith.constant 0 : i32
    return %arg0, %c0_i32 : i32, i32
  }
  func.func @transform_1(%arg0: i32) -> (i32, i32) {
    %c0_i32 = arith.constant 0 : i32
    %c0_i32_0 = arith.constant 0 : i32
    %c0_i32_1 = arith.constant 0 : i32
    return %c0_i32, %c0_i32_0 : i32, i32
  }
  func.func @transform_2(%arg0: i32) -> (i32, i32) {
    %c0_i32 = arith.constant 0 : i32
    %c0_i32_0 = arith.constant 0 : i32
    return %arg0, %c0_i32 : i32, i32
  }
}

</mosaic_0001>

<llo_original>
// kernel: tpu_custom_call.1
$region0: #{tpu_custom_call.1}
  #allocation0 [shape = 'u32[]', space=smem, size = 0x4, offset = 0x4, fixed_abs, tag = 'smem constant byte address 0x4 - core index']
  #allocation1 [shape = 'u32[144,128]{1,0:T(1,128)}', space=vmem, size = 0x12000, scoped, tag = 'internal scratch']
  %s0 = inlined_call_operand.hbm [shape: f32[16,32], index: 0, kind: input, shape index: {}]
  %s1 = inlined_call_operand.hbm [shape: f32[32,96], index: 1, kind: input, shape index: {}]
  %s2 = inlined_call_operand.hbm [shape: f32[16,96], index: 2, kind: output, shape index: {}]
  %s3 = sld [smem:[#allocation0]]
  $region26: #{tpu_custom_call.1} parent=0
    _
  %s5 = ssub.s32 1, %s3
  %s6 = scalar_select 0, %s5, %s3
  $region1: #{tpu_custom_call.1} parent=0
    #allocation2 [shape = 'u8[8192]{0}', space=vmem, size = 0x2000, scoped, tag = 'input window, operand 0, single buffered']
    #allocation3 [shape = 's32[1]{0}', space=sflag, size = 0x4, scoped, tag = 'scoped memory for tpu_custom_call.1']
    #allocation4 [shape = 's32[1]{0}', space=sflag, size = 0x4, scoped, tag = 'scoped memory for tpu_custom_call.1']
    #allocation5 [shape = 'u8[16384]{0}', space=vmem, size = 0x4000, scoped, tag = 'input window, operand 1, single buffered']
    #allocation6 [shape = 's32[1]{0}', space=sflag, size = 0x4, scoped, tag = 'scoped memory for tpu_custom_call.1']
    #allocation7 [shape = 'u8[8192]{0}', space=vmem, size = 0x2000, scoped, tag = 'output window, operand 0, single buffered']
    %7 = vsyncpa [#allocation3], 0
    %8 = vsyncpa [#allocation6], 0
    %9 = vsyncpa [#allocation4], 0
    // Predicated region
    $region2: #{tpu_custom_call.1} parent=1 // pred_check
      _
    $region3: #{tpu_custom_call.1} parent=1 // pred_check_branch
      %11 = sbr.rel (0) target = $region5
    $region4: #{tpu_custom_call.1} parent=1 // pred_region
      %s13 = ssub.s32 256, 256
      %14 = vsyncadd [#allocation3], %s13
      %s15 = sshll.u32 [#allocation2], 4
      %s16 = int_to_ptr.vmem [resolvable:$true] %s15
      %21 = dma.hbm_to_vmem [thread:$0]  %s0, 256, %s16, [#allocation3], 128, 128, 8
    $region5: #{tpu_custom_call.1} parent=1 // pred_fallthru
      _
    // Predicated region
    $region6: #{tpu_custom_call.1} parent=1 // pred_check
      _
    $region7: #{tpu_custom_call.1} parent=1 // pred_check_branch
      %23 = sbr.rel (0) target = $region9
    $region8: #{tpu_custom_call.1} parent=1 // pred_region
      %s25 = ssub.s32 512, 512
      %26 = vsyncadd [#allocation6], %s25
      %s27 = sshll.u32 [#allocation5], 4
      %s28 = int_to_ptr.vmem [resolvable:$true] %s27
      %33 = dma.hbm_to_vmem [thread:$0]  %s1, 512, %s28, [#allocation6], 128, 128, 8
    $region9: #{tpu_custom_call.1} parent=1 // pred_fallthru
      _
    // Predicated region
    $region10: #{tpu_custom_call.1} parent=1 // pred_check
      _
    $region11: #{tpu_custom_call.1} parent=1 // pred_check_branch
      %35 = sbr.rel (0) target = $region13
    $region12: #{tpu_custom_call.1} parent=1 // pred_region
      %36 = dma.done [#allocation3], 256
    $region13: #{tpu_custom_call.1} parent=1 // pred_fallthru
      _
    // Predicated region
    $region14: #{tpu_custom_call.1} parent=1 // pred_check
      _
    $region15: #{tpu_custom_call.1} parent=1 // pred_check_branch
      %38 = sbr.rel (0) target = $region17
    $region16: #{tpu_custom_call.1} parent=1 // pred_region
      %39 = dma.done [#allocation6], 512
    $region17: #{tpu_custom_call.1} parent=1 // pred_fallthru
      _
    %v40 = vld [vmem:[#allocation2] sm:$0xff]
    %v41 = vld [vmem:[#allocation2 + $0x8] sm:$0xff]
    %v42 = vld [vmem:[#allocation5] sm:$0xff]
    %v43 = vld [vmem:[#allocation5 + $0x8] sm:$0xff]
    %v44 = vld [vmem:[#allocation5 + $0x10] sm:$0xff]
    %v45 = vld [vmem:[#allocation5 + $0x18] sm:$0xff]
    %vm46 = vcmask 261120
    %v48 = vsel %vm46, %v40, 0
    %v51 = vsel %vm46, %v41, 0
    %53 = vmatprep.subr.mxu0 0.0
    %54 = vmatpush1.msra.mxu0 %v42
    %55 = vmatprep.subr.mxu0 0.0
    %56 = vmatpush1.msra.mxu0 %v43
    %57 = vmatprep.subr.mxu0 0.0
    %58 = vmatpush1.msra.mxu0 %v44
    %59 = vmatprep.subr.mxu0 0.0
    %60 = vmatpush1.msra.mxu0 %v45
    %61 = vmatprep.subr.mxu0 0.0
    %62 = vmatpush1.msra.mxu0 0.0
    %63 = vmatprep.subr.mxu0 0.0
    %64 = vmatpush1.msra.mxu0 0.0
    %65 = vmatprep.subr.mxu0 0.0
    %66 = vmatpush1.msra.mxu0 0.0
    %67 = vmatprep.subr.mxu0 0.0
    %68 = vmatpush1.msra.mxu0 0.0
    %69 = vmatprep.subr.mxu0 0.0
    %70 = vmatpush1.msra.mxu0 0.0
    %71 = vmatprep.subr.mxu0 0.0
    %72 = vmatpush1.msra.mxu0 0.0
    %73 = vmatprep.subr.mxu0 0.0
    %74 = vmatpush1.msra.mxu0 0.0
    %75 = vmatprep.subr.mxu0 0.0
    %76 = vmatpush1.msra.mxu0 0.0
    %77 = vmatprep.subr.mxu0 0.0
    %78 = vmatpush1.msra.mxu0 0.0
    %79 = vmatprep.subr.mxu0 0.0
    %80 = vmatpush1.msra.mxu0 0.0
    %81 = vmatprep.subr.mxu0 0.0
    %82 = vmatpush1.msra.mxu0 0.0
    %83 = vmatprep.subr.mxu0 0.0
    %84 = vmatpush1.msra.mxu0 0.0
    %85 = vmatprep.subr.mxu0 0.0
    %86 = vmatpush1.msra.mxu0 0.0
    %87 = vmatprep.subr.mxu0 0.0
    %88 = vmatpush1.msra.mxu0 0.0
    %89 = vmatprep.subr.mxu0 0.0
    %90 = vmatpush1.msra.mxu0 0.0
    %91 = vmatprep.subr.mxu0 0.0
    %92 = vmatpush1.msra.mxu0 0.0
    %93 = vmatprep.subr.mxu0 0.0
    %94 = vmatpush1.msra.mxu0 0.0
    %95 = vmatprep.subr.mxu0 0.0
    %96 = vmatpush1.msra.mxu0 0.0
    %97 = vmatprep.subr.mxu0 0.0
    %98 = vmatpush1.msra.mxu0 0.0
    %99 = vmatprep.subr.mxu0 0.0
    %100 = vmatpush1.msra.mxu0 0.0
    %101 = vmatprep.subr.mxu0 0.0
    %102 = vmatpush1.msra.mxu0 0.0
    %103 = vmatprep.subr.mxu0 0.0
    %104 = vmatpush1.msra.mxu0 0.0
    %105 = vmatprep.subr.mxu0 0.0
    %106 = vmatpush1.msra.mxu0 0.0
    %107 = vmatprep.subr.mxu0 0.0
    %108 = vmatpush1.msra.mxu0 0.0
    %109 = vmatprep.subr.mxu0 0.0
    %110 = vmatpush1.msra.mxu0 0.0
    %111 = vmatprep.subr.mxu0 0.0
    %112 = vmatpush1.msra.mxu0 0.0
    %113 = vmatprep.subr.mxu0 0.0
    %114 = vmatpush1.msra.mxu0 0.0
    %115 = vmatprep.subr.mxu0 0.0
    %116 = vmatpush1.msra.mxu0 0.0
    %117 = vmatprep.mubr.f32.mxu0 0.0
    %118 = vmatmul.mubr.f32.gmra.mrb[0].mxu0 %v48
    %v119 = vpop.f32.mrb[0].mxu0
    %v120 = vadd.f32 0.0, %v119
    %v121 = vpop.f32.mrb[0].mxu0
    %122 = vmatprep.mubr.f32.mxu0 0.0
    %123 = vmatmul.mubr.f32.gmra.mrb[0].mxu0 %v51
    %v124 = vpop.f32.mrb[0].mxu0
    %v125 = vadd.f32 0.0, %v124
    %v126 = vpop.f32.mrb[0].mxu0
    %127 = vdwg.mxu0
    %vm128 = vcmask 785408
    %129 = vst.msk [vmem:[#allocation7] sm:$0xff] %vm128, %v120
    %130 = vst.msk [vmem:[#allocation7 + $0x8] sm:$0xff] %vm128, %v125
    // Predicated region
    $region18: #{tpu_custom_call.1} parent=1 // pred_check
      _
    $region19: #{tpu_custom_call.1} parent=1 // pred_check_branch
      %132 = sbr.rel (0) target = $region21
    $region20: #{tpu_custom_call.1} parent=1 // pred_region
      %s134 = ssub.s32 256, 256
      %135 = vsyncadd [#allocation4], %s134
      %s136 = sshll.u32 [#allocation7], 4
      %s137 = int_to_ptr.vmem [resolvable:$true] %s136
      %142 = dma.vmem_to_hbm [thread:$0]  %s137, 256, %s2, [#allocation4], 128, 128, 8
    $region21: #{tpu_custom_call.1} parent=1 // pred_fallthru
      _
    // Predicated region
    $region22: #{tpu_custom_call.1} parent=1 // pred_check
      _
    $region23: #{tpu_custom_call.1} parent=1 // pred_check_branch
      %144 = sbr.rel (0) target = $region25
    $region24: #{tpu_custom_call.1} parent=1 // pred_region
      %145 = dma.done [#allocation4], 256
    $region25: #{tpu_custom_call.1} parent=1 // pred_fallthru
      _
    %146 = vsyncpa [#allocation3], 1
    %147 = vsyncpa [#allocation6], 1
    %148 = vsyncpa [#allocation4], 1

</llo_original>
